<compile_context>
chip_gen: v7x
topology: tpu7x:2x2x1
jax: 0.10.0
libtpu: 0.0.40
codegen_flags: <defaults>
</compile_context>

<pallas_src>
import functools
import math

import jax
import jax.numpy as jnp
from jax import lax
from jax.experimental import pallas as pl
from jax.experimental.pallas import tpu as pltpu

_LANE = 128


def _round_up(n, m):
    return -(-n // m) * m


def _pick_tile(t):
    for cand in (256, 128, 64, 32, 16, 8):
        if t % cand == 0:
            return cand
    return t  # small / odd T: one tile spanning the full sequence


def _flash_attn_kernel(xq_ref, xkv_ref,
                       wq_ref, bq_ref, wk_ref, bk_ref, wv_ref, bv_ref,
                       wh_ref, bh_ref,
                       o_ref,
                       q_sc, m_sc, l_sc, acc_sc,
                       *, dim_qk, tq, tk):
    qi = pl.program_id(1)
    ki = pl.program_id(2)
    scale = jnp.float32(1.0 / math.sqrt(dim_qk))

    # --- per-(b, q-tile) init: reset online-softmax state, project Q once ---
    @pl.when(ki == 0)
    def _init():
        m_sc[...] = jnp.full(m_sc.shape, -jnp.inf, m_sc.dtype)
        l_sc[...] = jnp.zeros(l_sc.shape, l_sc.dtype)
        acc_sc[...] = jnp.zeros(acc_sc.shape, acc_sc.dtype)
        xq = xq_ref[...].astype(jnp.bfloat16)
        q = jnp.dot(xq, wq_ref[...],
                    preferred_element_type=jnp.float32) + bq_ref[...]
        q_sc[...] = (q * scale).astype(jnp.bfloat16)

    # --- causal skip: only kv tiles at or below the diagonal do work ---
    @pl.when(ki <= qi)
    def _step():
        xkv = xkv_ref[...].astype(jnp.bfloat16)
        k = (jnp.dot(xkv, wk_ref[...],
                     preferred_element_type=jnp.float32)
             + bk_ref[...]).astype(jnp.bfloat16)
        v = (jnp.dot(xkv, wv_ref[...],
                     preferred_element_type=jnp.float32)
             + bv_ref[...]).astype(jnp.bfloat16)

        # Scores: contract the last dims directly (no k.T transpose).
        s = lax.dot_general(q_sc[...], k, (((1,), (1,)), ((), ())),
                            preferred_element_type=jnp.float32)   # (tq, tk)

        # Additive causal bias from tile-offset iotas; identically zero on
        # fully-lower (ki < qi) tiles, only the diagonal tile gets masked.
        row = qi * tq + lax.broadcasted_iota(jnp.int32, (tq, tk), 0)
        col = ki * tk + lax.broadcasted_iota(jnp.int32, (tq, tk), 1)
        s = s + jnp.where(col > row, jnp.float32(-1e30), jnp.float32(0.0))

        # Online softmax update (f32 stats).
        m_prev = m_sc[...]
        m_new = jnp.maximum(m_prev, jnp.max(s, axis=-1, keepdims=True))
        alpha = jnp.exp(m_prev - m_new)
        p = jnp.exp(s - m_new)
        l_sc[...] = alpha * l_sc[...] + jnp.sum(p, axis=-1, keepdims=True)
        acc_sc[...] = alpha * acc_sc[...] + jnp.dot(
            p.astype(jnp.bfloat16), v, preferred_element_type=jnp.float32)
        m_sc[...] = m_new

    # --- diagonal tile is the last processed kv tile: finalize + W_h ---
    @pl.when(ki == qi)
    def _finalize():
        attn = acc_sc[...] * pl.reciprocal(l_sc[...], approx=True)  # EUP vrcp
        out = jnp.dot(attn.astype(jnp.bfloat16), wh_ref[...],
                      preferred_element_type=jnp.float32) + bh_ref[...]
        o_ref[...] = out.astype(o_ref.dtype)


def prepare_masked_attention_params(wq, bq, wk, bk, wv, bv, wh, bh):
    """One-time parameter prep: lane-pad to 128 multiples, pre-cast to bf16."""
    dim_qk = wq.shape[1]
    dim_v = wv.shape[1]
    dim_out = wh.shape[1]
    p_qk = _round_up(dim_qk, _LANE)
    p_v = _round_up(dim_v, _LANE)
    p_out = _round_up(dim_out, _LANE)

    def pad_cols(a, to):
        return a if a.shape[1] == to else jnp.pad(a, ((0, 0), (0, to - a.shape[1])))

    params = dict(
        wq=pad_cols(wq, p_qk).astype(jnp.bfloat16),
        bq=pad_cols(bq, p_qk).astype(jnp.float32),
        wk=pad_cols(wk, p_qk).astype(jnp.bfloat16),
        bk=pad_cols(bk, p_qk).astype(jnp.float32),
        wv=pad_cols(wv, p_v).astype(jnp.bfloat16),
        bv=pad_cols(bv, p_v).astype(jnp.float32),
        # zero ROWS for the padded V columns, zero COLS for the padded output.
        wh=jnp.pad(wh, ((0, p_v - dim_v), (0, p_out - dim_out))).astype(jnp.bfloat16),
        bh=pad_cols(bh, p_out).astype(jnp.float32),
    )
    dims = dict(dim_qk=dim_qk, dim_out=dim_out, p_qk=p_qk, p_v=p_v, p_out=p_out)
    return params, dims


def masked_attention(x, params, dims):
    B, T, D_in = x.shape
    p_qk, p_v, p_out = dims["p_qk"], dims["p_v"], dims["p_out"]
    tile = _pick_tile(T)
    n_t = T // tile

    kernel = functools.partial(_flash_attn_kernel,
                               dim_qk=dims["dim_qk"], tq=tile, tk=tile)

    full = lambda b, qi, ki: (0, 0)

    # Rough VMEM estimate: double-buffered x/out blocks + weights + scratch
    # + score/probability intermediates; clamp to [16 MiB, 64 MiB].
    f32, bf16 = 4, 2
    est = (2 * (2 * tile * D_in * f32 + tile * p_out * f32)
           + (D_in * (2 * p_qk + p_v) + p_v * p_out) * bf16
           + (2 * p_qk + p_v + p_out) * f32
           + tile * p_qk * bf16 + tile * p_v * f32 + 2 * tile * f32
           + 4 * tile * tile * f32 + tile * max(p_qk, p_v) * (bf16 + f32))
    vmem_limit = int(min(max(4 * est, 16 << 20), 64 << 20))

    out = pl.pallas_call(
        kernel,
        out_shape=jax.ShapeDtypeStruct((B, T, p_out), x.dtype),
        grid_spec=pltpu.PrefetchScalarGridSpec(
            num_scalar_prefetch=0,
            grid=(B, n_t, n_t),
            in_specs=[
                pl.BlockSpec((None, tile, D_in), lambda b, qi, ki: (b, qi, 0)),  # x (q rows)
                pl.BlockSpec((None, tile, D_in), lambda b, qi, ki: (b, ki, 0)),  # x (kv rows)
                pl.BlockSpec((D_in, p_qk), full),   # W_q (bf16, lane-padded)
                pl.BlockSpec((1, p_qk), full),      # b_q
                pl.BlockSpec((D_in, p_qk), full),   # W_k
                pl.BlockSpec((1, p_qk), full),      # b_k
                pl.BlockSpec((D_in, p_v), full),    # W_v
                pl.BlockSpec((1, p_v), full),       # b_v
                pl.BlockSpec((p_v, p_out), full),   # W_h
                pl.BlockSpec((1, p_out), full),     # b_h
            ],
            out_specs=pl.BlockSpec((None, tile, p_out),
                                   lambda b, qi, ki: (b, qi, 0)),
            scratch_shapes=[
                pltpu.VMEM((tile, p_qk), jnp.bfloat16),   # scaled Q tile
                pltpu.VMEM((tile, 1), jnp.float32),       # running max
                pltpu.VMEM((tile, 1), jnp.float32),       # running denom
                pltpu.VMEM((tile, p_v), jnp.float32),     # running accumulator
            ],
        ),
        compiler_params=pltpu.CompilerParams(
            dimension_semantics=("parallel", "parallel", "arbitrary"),
            vmem_limit_bytes=vmem_limit),
    )(x, x,
      params["wq"], params["bq"], params["wk"], params["bk"],
      params["wv"], params["bv"], params["wh"], params["bh"])

    dim_out = dims["dim_out"]
    return out[..., :dim_out] if p_out != dim_out else out


def masked_attention_ref(x, wq, bq, wk, bk, wv, bv, wh, bh):
    """Pure-JAX reference mirroring the PyTorch forward (eval mode)."""
    q = x @ wq + bq
    k = x @ wk + bk
    v = x @ wv + bv
    d_k = math.sqrt(k.shape[-1])
    scores = jnp.einsum("btd,bsd->bts", q, k) / d_k
    T = x.shape[1]
    causal = jnp.triu(jnp.ones((T, T), dtype=bool), k=1)
    scores = jnp.where(causal[None], -jnp.inf, scores)
    w = jax.nn.softmax(scores, axis=-1)
    attn_out = jnp.einsum("bts,bsd->btd", w, v)
    return attn_out @ wh + bh


if __name__ == "__main__":
    # Small config consistent with the module:
    #   dec_dim_in=32, dim_proj_QK=32, dim_proj_V=32, dec_dim_out=32
    B, T = 2, 8
    dec_dim_in, dim_proj_qk, dim_proj_v, dec_dim_out = 32, 32, 32, 32

    key = jax.random.PRNGKey(0)
    keys = jax.random.split(key, 9)
    x = jax.random.normal(keys[0], (B, T, dec_dim_in), dtype=jnp.float32)

    # Deterministic "nn.Linear"-style parameters, stored as (in, out).
    def linear_params(kw, kb, fan_in, fan_out):
        bound = 1.0 / math.sqrt(fan_in)
        w = jax.random.uniform(kw, (fan_in, fan_out), jnp.float32, -bound, bound)
        b = jax.random.uniform(kb, (1, fan_out), jnp.float32, -bound, bound)
        return w, b

    wq, bq = linear_params(keys[1], keys[2], dec_dim_in, dim_proj_qk)
    wk, bk = linear_params(keys[3], keys[4], dec_dim_in, dim_proj_qk)
    wv, bv = linear_params(keys[5], keys[6], dec_dim_in, dim_proj_v)
    wh, bh = linear_params(keys[7], keys[8], dim_proj_v, dec_dim_out)

    # One-time parameter prep (padding / bf16 cast hoisted out of the hot path).
    params, dims = prepare_masked_attention_params(wq, bq, wk, bk, wv, bv, wh, bh)

    out = masked_attention(x, params, dims)
    out = jax.block_until_ready(out)

    ref = masked_attention_ref(x, wq, bq, wk, bk, wv, bv, wh, bh)
    assert out.shape == (B, T, dec_dim_out)
    # Tolerance covers bf16 MXU operands and the approximate EUP reciprocal
    # used for the softmax denominator.
    assert jnp.allclose(out, ref, atol=2e-2, rtol=2e-2), "mismatch vs reference"

    print("KERNEL_OK")
</pallas_src>

<mosaic_0001>
module attributes {stable_mosaic.version = 11 : i64} {
  func.func @_flash_attn_kernel(%arg0: i32, %arg1: i32, %arg2: i32, %arg3: memref<1x8x32xf32, #tpu.memory_space<vmem>>, %arg4: memref<1x8x32xf32, #tpu.memory_space<vmem>>, %arg5: memref<32x128xbf16, #tpu.memory_space<vmem>>, %arg6: memref<1x128xf32, #tpu.memory_space<vmem>>, %arg7: memref<32x128xbf16, #tpu.memory_space<vmem>>, %arg8: memref<1x128xf32, #tpu.memory_space<vmem>>, %arg9: memref<32x128xbf16, #tpu.memory_space<vmem>>, %arg10: memref<1x128xf32, #tpu.memory_space<vmem>>, %arg11: memref<128x128xbf16, #tpu.memory_space<vmem>>, %arg12: memref<1x128xf32, #tpu.memory_space<vmem>>, %arg13: memref<1x8x128xf32, #tpu.memory_space<vmem>>, %arg14: memref<8x128xbf16, #tpu.memory_space<vmem>>, %arg15: memref<8x1xf32, #tpu.memory_space<vmem>>, %arg16: memref<8x1xf32, #tpu.memory_space<vmem>>, %arg17: memref<8x128xf32, #tpu.memory_space<vmem>>) attributes {dimension_semantics = [#tpu.dimension_semantics<parallel>, #tpu.dimension_semantics<parallel>, #tpu.dimension_semantics<arbitrary>], iteration_bounds = array<i64: 2, 1, 1>, scalar_prefetch = 0 : i64, scratch_operands = 4 : i64, tpu.core_type = #tpu.core_type<tc>, window_params = [{transform_indices = @transform_0, window_bounds = array<i64: 1, 8, 32>}, {transform_indices = @transform_1, window_bounds = array<i64: 1, 8, 32>}, {pipeline_mode = #tpu.pipeline_mode<synchronous>, transform_indices = @transform_2, window_bounds = array<i64: 32, 128>}, {pipeline_mode = #tpu.pipeline_mode<synchronous>, transform_indices = @transform_3, window_bounds = array<i64: 1, 128>}, {pipeline_mode = #tpu.pipeline_mode<synchronous>, transform_indices = @transform_4, window_bounds = array<i64: 32, 128>}, {pipeline_mode = #tpu.pipeline_mode<synchronous>, transform_indices = @transform_5, window_bounds = array<i64: 1, 128>}, {pipeline_mode = #tpu.pipeline_mode<synchronous>, transform_indices = @transform_6, window_bounds = array<i64: 32, 128>}, {pipeline_mode = #tpu.pipeline_mode<synchronous>, transform_indices = @transform_7, window_bounds = array<i64: 1, 128>}, {pipeline_mode = #tpu.pipeline_mode<synchronous>, transform_indices = @transform_8, window_bounds = array<i64: 128, 128>}, {pipeline_mode = #tpu.pipeline_mode<synchronous>, transform_indices = @transform_9, window_bounds = array<i64: 1, 128>}, {transform_indices = @transform_10, window_bounds = array<i64: 1, 8, 128>}]} {
    %c0_i32 = arith.constant 0 : i32
    %0 = arith.cmpi eq, %arg2, %c0_i32 : i32
    %1 = arith.extui %0 : i1 to i32
    %cst = arith.constant 0.176776692 : f32
    %c0_i32_0 = arith.constant 0 : i32
    %2 = arith.cmpi ne, %1, %c0_i32_0 : i32
    scf.if %2 {
      %cst_3 = arith.constant 0xFF800000 : f32
      %9 = vector.broadcast %cst_3 : f32 to vector<8x1xf32>
      %c0 = arith.constant 0 : index
      %c0_4 = arith.constant 0 : index
      %10 = vector.load %arg15[%c0, %c0_4] : memref<8x1xf32, #tpu.memory_space<vmem>>, vector<8x1xf32>
      tpu.vector_store %arg15[%c0, %c0_4], %9 {strides = array<i32>} : memref<8x1xf32, #tpu.memory_space<vmem>>, vector<8x1xf32>,
      %cst_5 = arith.constant 0.000000e+00 : f32
      %11 = vector.broadcast %cst_5 : f32 to vector<8x1xf32>
      %c0_6 = arith.constant 0 : index
      %c0_7 = arith.constant 0 : index
      %12 = vector.load %arg16[%c0_6, %c0_7] : memref<8x1xf32, #tpu.memory_space<vmem>>, vector<8x1xf32>
      tpu.vector_store %arg16[%c0_6, %c0_7], %11 {strides = array<i32>} : memref<8x1xf32, #tpu.memory_space<vmem>>, vector<8x1xf32>,
      %cst_8 = arith.constant 0.000000e+00 : f32
      %13 = vector.broadcast %cst_8 : f32 to vector<8x128xf32>
      %c0_9 = arith.constant 0 : index
      %c0_10 = arith.constant 0 : index
      %14 = vector.load %arg17[%c0_9, %c0_10] : memref<8x128xf32, #tpu.memory_space<vmem>>, vector<8x128xf32>
      tpu.vector_store %arg17[%c0_9, %c0_10], %13 {strides = array<i32>} : memref<8x128xf32, #tpu.memory_space<vmem>>, vector<8x128xf32>,
      %c0_11 = arith.constant 0 : index
      %c0_12 = arith.constant 0 : index
      %c0_13 = arith.constant 0 : index
      %15 = vector.load %arg3[%c0_11, %c0_12, %c0_13] : memref<1x8x32xf32, #tpu.memory_space<vmem>>, vector<1x8x32xf32>
      %16 = vector.shape_cast %15 : vector<1x8x32xf32> to vector<8x32xf32>
      %17 = arith.truncf %16 : vector<8x32xf32> to vector<8x32xbf16>
      %c0_14 = arith.constant 0 : index
      %c0_15 = arith.constant 0 : index
      %18 = vector.load %arg5[%c0_14, %c0_15] : memref<32x128xbf16, #tpu.memory_space<vmem>>, vector<32x128xbf16>
      %cst_16 = arith.constant dense<0.000000e+00> : vector<8x128xf32>
      %19 = tpu.matmul %17, %18, %cst_16 {dimension_numbers = #tpu.dot_dimension_numbers<[1], [0], [0], [1], [0, 0, 1, 1], [], []>} : vector<8x32xbf16>, vector<32x128xbf16>, vector<8x128xf32> -> vector<8x128xf32>
      %c0_17 = arith.constant 0 : index
      %c0_18 = arith.constant 0 : index
      %20 = vector.load %arg6[%c0_17, %c0_18] : memref<1x128xf32, #tpu.memory_space<vmem>>, vector<1x128xf32>
      %21 = vector.broadcast %20 : vector<1x128xf32> to vector<8x128xf32>
      %22 = arith.addf %19, %21 : vector<8x128xf32>
      %23 = vector.broadcast %cst : f32 to vector<8x128xf32>
      %24 = arith.mulf %22, %23 : vector<8x128xf32>
      %25 = arith.truncf %24 : vector<8x128xf32> to vector<8x128xbf16>
      %c0_19 = arith.constant 0 : index
      %c0_20 = arith.constant 0 : index
      %26 = vector.load %arg14[%c0_19, %c0_20] : memref<8x128xbf16, #tpu.memory_space<vmem>>, vector<8x128xbf16>
      tpu.vector_store %arg14[%c0_19, %c0_20], %25 {strides = array<i32>} : memref<8x128xbf16, #tpu.memory_space<vmem>>, vector<8x128xbf16>,
    } else {
    }
    %3 = arith.cmpi sle, %arg2, %arg1 : i32
    %4 = arith.extui %3 : i1 to i32
    %c0_i32_1 = arith.constant 0 : i32
    %5 = arith.cmpi ne, %4, %c0_i32_1 : i32
    scf.if %5 {
      %c0 = arith.constant 0 : index
      %c0_3 = arith.constant 0 : index
      %c0_4 = arith.constant 0 : index
      %9 = vector.load %arg4[%c0, %c0_3, %c0_4] : memref<1x8x32xf32, #tpu.memory_space<vmem>>, vector<1x8x32xf32>
      %10 = vector.shape_cast %9 : vector<1x8x32xf32> to vector<8x32xf32>
      %11 = arith.truncf %10 : vector<8x32xf32> to vector<8x32xbf16>
      %c0_5 = arith.constant 0 : index
      %c0_6 = arith.constant 0 : index
      %12 = vector.load %arg7[%c0_5, %c0_6] : memref<32x128xbf16, #tpu.memory_space<vmem>>, vector<32x128xbf16>
      %cst_7 = arith.constant dense<0.000000e+00> : vector<8x128xf32>
      %13 = tpu.matmul %11, %12, %cst_7 {dimension_numbers = #tpu.dot_dimension_numbers<[1], [0], [0], [1], [0, 0, 1, 1], [], []>} : vector<8x32xbf16>, vector<32x128xbf16>, vector<8x128xf32> -> vector<8x128xf32>
      %c0_8 = arith.constant 0 : index
      %c0_9 = arith.constant 0 : index
      %14 = vector.load %arg8[%c0_8, %c0_9] : memref<1x128xf32, #tpu.memory_space<vmem>>, vector<1x128xf32>
      %15 = vector.broadcast %14 : vector<1x128xf32> to vector<8x128xf32>
      %16 = arith.addf %13, %15 : vector<8x128xf32>
      %17 = arith.truncf %16 : vector<8x128xf32> to vector<8x128xbf16>
      %c0_10 = arith.constant 0 : index
      %c0_11 = arith.constant 0 : index
      %18 = vector.load %arg9[%c0_10, %c0_11] : memref<32x128xbf16, #tpu.memory_space<vmem>>, vector<32x128xbf16>
      %cst_12 = arith.constant dense<0.000000e+00> : vector<8x128xf32>
      %19 = tpu.matmul %11, %18, %cst_12 {dimension_numbers = #tpu.dot_dimension_numbers<[1], [0], [0], [1], [0, 0, 1, 1], [], []>} : vector<8x32xbf16>, vector<32x128xbf16>, vector<8x128xf32> -> vector<8x128xf32>
      %c0_13 = arith.constant 0 : index
      %c0_14 = arith.constant 0 : index
      %20 = vector.load %arg10[%c0_13, %c0_14] : memref<1x128xf32, #tpu.memory_space<vmem>>, vector<1x128xf32>
      %21 = vector.broadcast %20 : vector<1x128xf32> to vector<8x128xf32>
      %22 = arith.addf %19, %21 : vector<8x128xf32>
      %23 = arith.truncf %22 : vector<8x128xf32> to vector<8x128xbf16>
      %c0_15 = arith.constant 0 : index
      %c0_16 = arith.constant 0 : index
      %24 = vector.load %arg14[%c0_15, %c0_16] : memref<8x128xbf16, #tpu.memory_space<vmem>>, vector<8x128xbf16>
      %cst_17 = arith.constant dense<0.000000e+00> : vector<8x8xf32>
      %25 = tpu.matmul %24, %17, %cst_17 {dimension_numbers = #tpu.dot_dimension_numbers<[1], [1], [0], [0], [0, 0, 1, 0], [], []>} : vector<8x128xbf16>, vector<8x128xbf16>, vector<8x8xf32> -> vector<8x8xf32>
      %c8_i32 = arith.constant 8 : i32
      %26 = arith.muli %arg1, %c8_i32 : i32
      %27 = tpu.iota {dimensions = array<i32: 0>} : vector<8x8xi32>
      %28 = vector.broadcast %26 : i32 to vector<8x8xi32>
      %29 = arith.addi %28, %27 : vector<8x8xi32>
      %c8_i32_18 = arith.constant 8 : i32
      %30 = arith.muli %arg2, %c8_i32_18 : i32
      %31 = tpu.iota {dimensions = array<i32: 1>} : vector<8x8xi32>
      %32 = vector.broadcast %30 : i32 to vector<8x8xi32>
      %33 = arith.addi %32, %31 : vector<8x8xi32>
      %34 = arith.cmpi sgt, %33, %29 : vector<8x8xi32>
      %cst_19 = arith.constant -1.000000e+30 : f32
      %cst_20 = arith.constant 0.000000e+00 : f32
      %35 = vector.broadcast %cst_19 : f32 to vector<8x8xf32>
      %36 = vector.broadcast %cst_20 : f32 to vector<8x8xf32>
      %37 = arith.select %34, %35, %36 : vector<8x8xi1>, vector<8x8xf32>
      %38 = arith.addf %25, %37 : vector<8x8xf32>
      %c0_21 = arith.constant 0 : index
      %c0_22 = arith.constant 0 : index
      %39 = vector.load %arg15[%c0_21, %c0_22] : memref<8x1xf32, #tpu.memory_space<vmem>>, vector<8x1xf32>
      %cst_23 = arith.constant dense<0xFF800000> : vector<8xf32>
      %40 = vector.multi_reduction <maximumf>, %38, %cst_23 [1] : vector<8x8xf32> to vector<8xf32>
      %41 = vector.shape_cast %40 : vector<8xf32> to vector<8x1xf32>
      %42 = arith.maximumf %39, %41 : vector<8x1xf32>
      %43 = arith.subf %39, %42 : vector<8x1xf32>
      %44 = math.exp %43 : vector<8x1xf32>
      %45 = vector.broadcast %42 : vector<8x1xf32> to vector<8x8xf32>
      %46 = arith.subf %38, %45 : vector<8x8xf32>
      %47 = math.exp %46 : vector<8x8xf32>
      %c0_24 = arith.constant 0 : index
      %c0_25 = arith.constant 0 : index
      %48 = vector.load %arg16[%c0_24, %c0_25] : memref<8x1xf32, #tpu.memory_space<vmem>>, vector<8x1xf32>
      %49 = arith.mulf %44, %48 : vector<8x1xf32>
      %cst_26 = arith.constant dense<0.000000e+00> : vector<8xf32>
      %50 = vector.multi_reduction <add>, %47, %cst_26 [1] : vector<8x8xf32> to vector<8xf32>
      %51 = vector.shape_cast %50 : vector<8xf32> to vector<8x1xf32>
      %52 = arith.addf %49, %51 : vector<8x1xf32>
      %c0_27 = arith.constant 0 : index
      %c0_28 = arith.constant 0 : index
      %53 = vector.load %arg16[%c0_27, %c0_28] : memref<8x1xf32, #tpu.memory_space<vmem>>, vector<8x1xf32>
      tpu.vector_store %arg16[%c0_27, %c0_28], %52 {strides = array<i32>} : memref<8x1xf32, #tpu.memory_space<vmem>>, vector<8x1xf32>,
      %c0_29 = arith.constant 0 : index
      %c0_30 = arith.constant 0 : index
      %54 = vector.load %arg17[%c0_29, %c0_30] : memref<8x128xf32, #tpu.memory_space<vmem>>, vector<8x128xf32>
      %55 = vector.broadcast %44 : vector<8x1xf32> to vector<8x128xf32>
      %56 = arith.mulf %55, %54 : vector<8x128xf32>
      %57 = arith.truncf %47 : vector<8x8xf32> to vector<8x8xbf16>
      %cst_31 = arith.constant dense<0.000000e+00> : vector<8x128xf32>
      %58 = tpu.matmul %57, %23, %cst_31 {dimension_numbers = #tpu.dot_dimension_numbers<[1], [0], [0], [1], [0, 0, 1, 1], [], []>} : vector<8x8xbf16>, vector<8x128xbf16>, vector<8x128xf32> -> vector<8x128xf32>
      %59 = arith.addf %56, %58 : vector<8x128xf32>
      %c0_32 = arith.constant 0 : index
      %c0_33 = arith.constant 0 : index
      %60 = vector.load %arg17[%c0_32, %c0_33] : memref<8x128xf32, #tpu.memory_space<vmem>>, vector<8x128xf32>
      tpu.vector_store %arg17[%c0_32, %c0_33], %59 {strides = array<i32>} : memref<8x128xf32, #tpu.memory_space<vmem>>, vector<8x128xf32>,
      %c0_34 = arith.constant 0 : index
      %c0_35 = arith.constant 0 : index
      %61 = vector.load %arg15[%c0_34, %c0_35] : memref<8x1xf32, #tpu.memory_space<vmem>>, vector<8x1xf32>
      tpu.vector_store %arg15[%c0_34, %c0_35], %42 {strides = array<i32>} : memref<8x1xf32, #tpu.memory_space<vmem>>, vector<8x1xf32>,
    } else {
    }
    %6 = arith.cmpi eq, %arg2, %arg1 : i32
    %7 = arith.extui %6 : i1 to i32
    %c0_i32_2 = arith.constant 0 : i32
    %8 = arith.cmpi ne, %7, %c0_i32_2 : i32
    scf.if %8 {
      %c0 = arith.constant 0 : index
      %c0_3 = arith.constant 0 : index
      %9 = vector.load %arg17[%c0, %c0_3] : memref<8x128xf32, #tpu.memory_space<vmem>>, vector<8x128xf32>
      %c0_4 = arith.constant 0 : index
      %c0_5 = arith.constant 0 : index
      %10 = vector.load %arg16[%c0_4, %c0_5] : memref<8x1xf32, #tpu.memory_space<vmem>>, vector<8x1xf32>
      %11 = tpu.reciprocal %10 {approx = true} : vector<8x1xf32> -> vector<8x1xf32>
      %12 = vector.broadcast %11 : vector<8x1xf32> to vector<8x128xf32>
      %13 = arith.mulf %9, %12 : vector<8x128xf32>
      %14 = arith.truncf %13 : vector<8x128xf32> to vector<8x128xbf16>
      %c0_6 = arith.constant 0 : index
      %c0_7 = arith.constant 0 : index
      %15 = vector.load %arg11[%c0_6, %c0_7] : memref<128x128xbf16, #tpu.memory_space<vmem>>, vector<128x128xbf16>
      %cst_8 = arith.constant dense<0.000000e+00> : vector<8x128xf32>
      %16 = tpu.matmul %14, %15, %cst_8 {dimension_numbers = #tpu.dot_dimension_numbers<[1], [0], [0], [1], [0, 0, 1, 1], [], []>} : vector<8x128xbf16>, vector<128x128xbf16>, vector<8x128xf32> -> vector<8x128xf32>
      %c0_9 = arith.constant 0 : index
      %c0_10 = arith.constant 0 : index
      %17 = vector.load %arg12[%c0_9, %c0_10] : memref<1x128xf32, #tpu.memory_space<vmem>>, vector<1x128xf32>
      %18 = vector.broadcast %17 : vector<1x128xf32> to vector<8x128xf32>
      %19 = arith.addf %16, %18 : vector<8x128xf32>
      %c0_11 = arith.constant 0 : index
      %c0_12 = arith.constant 0 : index
      %c0_13 = arith.constant 0 : index
      %20 = vector.load %arg13[%c0_11, %c0_12, %c0_13] : memref<1x8x128xf32, #tpu.memory_space<vmem>>, vector<1x8x128xf32>
      %21 = vector.shape_cast %20 : vector<1x8x128xf32> to vector<8x128xf32>
      %22 = vector.shape_cast %19 : vector<8x128xf32> to vector<1x8x128xf32>
      tpu.vector_store %arg13[%c0_11, %c0_12, %c0_13], %22 {strides = array<i32>} : memref<1x8x128xf32, #tpu.memory_space<vmem>>, vector<1x8x128xf32>,
    } else {
    }
    return
  }
  func.func @transform_0(%arg0: i32, %arg1: i32, %arg2: i32) -> (i32, i32, i32) {
    %c0_i32 = arith.constant 0 : i32
    %c0_i32_0 = arith.constant 0 : i32
    return %arg0, %arg1, %c0_i32 : i32, i32, i32
  }
  func.func @transform_1(%arg0: i32, %arg1: i32, %arg2: i32) -> (i32, i32, i32) {
    %c0_i32 = arith.constant 0 : i32
    %c0_i32_0 = arith.constant 0 : i32
    return %arg0, %arg2, %c0_i32 : i32, i32, i32
  }
  func.func @transform_2(%arg0: i32, %arg1: i32, %arg2: i32) -> (i32, i32) {
    %c0_i32 = arith.constant 0 : i32
    %c0_i32_0 = arith.constant 0 : i32
    %c0_i32_1 = arith.constant 0 : i32
    return %c0_i32, %c0_i32_0 : i32, i32
  }
  func.func @transform_3(%arg0: i32, %arg1: i32, %arg2: i32) -> (i32, i32) {
    %c0_i32 = arith.constant 0 : i32
    %c0_i32_0 = arith.constant 0 : i32
    %c0_i32_1 = arith.constant 0 : i32
    return %c0_i32, %c0_i32_0 : i32, i32
  }
  func.func @transform_4(%arg0: i32, %arg1: i32, %arg2: i32) -> (i32, i32) {
    %c0_i32 = arith.constant 0 : i32
    %c0_i32_0 = arith.constant 0 : i32
    %c0_i32_1 = arith.constant 0 : i32
    return %c0_i32, %c0_i32_0 : i32, i32
  }
  func.func @transform_5(%arg0: i32, %arg1: i32, %arg2: i32) -> (i32, i32) {
    %c0_i32 = arith.constant 0 : i32
    %c0_i32_0 = arith.constant 0 : i32
    %c0_i32_1 = arith.constant 0 : i32
    return %c0_i32, %c0_i32_0 : i32, i32
  }
  func.func @transform_6(%arg0: i32, %arg1: i32, %arg2: i32) -> (i32, i32) {
    %c0_i32 = arith.constant 0 : i32
    %c0_i32_0 = arith.constant 0 : i32
    %c0_i32_1 = arith.constant 0 : i32
    return %c0_i32, %c0_i32_0 : i32, i32
  }
  func.func @transform_7(%arg0: i32, %arg1: i32, %arg2: i32) -> (i32, i32) {
    %c0_i32 = arith.constant 0 : i32
    %c0_i32_0 = arith.constant 0 : i32
    %c0_i32_1 = arith.constant 0 : i32
    return %c0_i32, %c0_i32_0 : i32, i32
  }
  func.func @transform_8(%arg0: i32, %arg1: i32, %arg2: i32) -> (i32, i32) {
    %c0_i32 = arith.constant 0 : i32
    %c0_i32_0 = arith.constant 0 : i32
    %c0_i32_1 = arith.constant 0 : i32
    return %c0_i32, %c0_i32_0 : i32, i32
  }
  func.func @transform_9(%arg0: i32, %arg1: i32, %arg2: i32) -> (i32, i32) {
    %c0_i32 = arith.constant 0 : i32
    %c0_i32_0 = arith.constant 0 : i32
    %c0_i32_1 = arith.constant 0 : i32
    return %c0_i32, %c0_i32_0 : i32, i32
  }
  func.func @transform_10(%arg0: i32, %arg1: i32, %arg2: i32) -> (i32, i32, i32) {
    %c0_i32 = arith.constant 0 : i32
    %c0_i32_0 = arith.constant 0 : i32
    return %arg0, %arg1, %c0_i32 : i32, i32, i32
  }
}

</mosaic_0001>

<llo_original>
// kernel: tpu_custom_call.1
$region0: #{tpu_custom_call.1}
  #allocation0 [shape = 'u32[]', space=smem, size = 0x4, offset = 0x4, fixed_abs, tag = 'smem constant byte address 0x4 - core index']
  #allocation1 [shape = 'u32[144,128]{1,0:T(1,128)}', space=vmem, size = 0x12000, scoped, tag = 'internal scratch']
  #allocation2 [shape = 'bf16[8,128]{1,0:T(8,128)(2,1)}', space=vmem, size = 0x800, scoped, tag = 'scratch operand']
  #allocation3 [shape = 'f32[8,1]{1,0:T(8,128)}', space=vmem, size = 0x1000, scoped, tag = 'scratch operand']
  #allocation4 [shape = 'f32[8,1]{1,0:T(8,128)}', space=vmem, size = 0x1000, scoped, tag = 'scratch operand']
  #allocation5 [shape = 'f32[8,128]{1,0:T(8,128)}', space=vmem, size = 0x1000, scoped, tag = 'scratch operand']
  %s0 = inlined_call_operand.hbm [shape: f32[2,8,32], index: 0, kind: input, shape index: {}]
  %s1 = inlined_call_operand.hbm [shape: f32[2,8,32], index: 1, kind: input, shape index: {}]
  %s2 = inlined_call_operand.hbm [shape: bf16[32,128], index: 2, kind: input, shape index: {}]
  %s3 = inlined_call_operand.vmem [shape: f32[1,128], index: 3, kind: input, shape index: {}]
  %s4 = inlined_call_operand.hbm [shape: bf16[32,128], index: 4, kind: input, shape index: {}]
  %s5 = inlined_call_operand.vmem [shape: f32[1,128], index: 5, kind: input, shape index: {}]
  %s6 = inlined_call_operand.vmem [shape: bf16[32,128], index: 6, kind: input, shape index: {}]
  %s7 = inlined_call_operand.vmem [shape: f32[1,128], index: 7, kind: input, shape index: {}]
  %s8 = inlined_call_operand.hbm [shape: bf16[128,128], index: 8, kind: input, shape index: {}]
  %s9 = inlined_call_operand.vmem [shape: f32[1,128], index: 9, kind: input, shape index: {}]
  %s10 = inlined_call_operand.hbm [shape: f32[2,8,128], index: 10, kind: output, shape index: {}]
  %s11 = sld [smem:[#allocation0]]
  $region105: #{tpu_custom_call.1} parent=0
    _
  %s13 = ssub.s32 1, %s11
  %s14 = scalar_select 0, %s13, %s11
  $region1: #{tpu_custom_call.1} parent=0
    #allocation6 [shape = 'u8[8192]{0}', space=vmem, size = 0x2000, scoped, tag = 'input window, operand 0']
    #allocation7 [shape = 's32[2]{0}', space=sflag, size = 0x8, scoped, tag = 'scoped memory for tpu_custom_call.1']
    #allocation8 [shape = 's32[2]{0}', space=sflag, size = 0x8, scoped, tag = 'scoped memory for tpu_custom_call.1']
    #allocation9 [shape = 'u8[8192]{0}', space=vmem, size = 0x2000, scoped, tag = 'input window, operand 1']
    #allocation10 [shape = 's32[2]{0}', space=sflag, size = 0x8, scoped, tag = 'scoped memory for tpu_custom_call.1']
    #allocation11 [shape = 'u8[8192]{0}', space=vmem, size = 0x2000, scoped, tag = 'input window, operand 2, single buffered']
    #allocation12 [shape = 'u8[8192]{0}', space=vmem, size = 0x2000, scoped, tag = 'input window, operand 4, single buffered']
    #allocation13 [shape = 's32[1]{0}', space=sflag, size = 0x4, scoped, tag = 'scoped memory for tpu_custom_call.1']
    #allocation14 [shape = 'u8[32768]{0}', space=vmem, size = 0x8000, scoped, tag = 'input window, operand 8, single buffered']
    #allocation15 [shape = 'u8[8192]{0}', space=vmem, size = 0x2000, scoped, tag = 'output window, operand 0']
    %15 = vsyncpa [#allocation7], 0
    %s16 = scalar_lea.sflag [#allocation7], 1
    %17 = vsyncpa %s16, 0
    %18 = vsyncpa [#allocation10], 0
    %s19 = scalar_lea.sflag [#allocation10], 1
    %20 = vsyncpa %s19, 0
    %21 = vsyncpa [#allocation13], 0
    %22 = vsyncpa [#allocation8], 0
    %s23 = scalar_lea.sflag [#allocation8], 1
    %24 = vsyncpa %s23, 0
    loop: start=0, step=1, limit=4
    $region2: #{tpu_custom_call.1} parent=1 // loop_pre_header
      _
    $region3: #{tpu_custom_call.1} parent=1 // loop_header
      %s26 = sphi 0, %s30
      %p27 = scmp.ge.s32.totalorder %s26, 4
      %s33 = sphi 0, %s52
      %s34 = sphi 0, %s48
      %s35 = sphi 0, %s44
      %s36 = sphi 0, %s33
      %s37 = sphi 0, %s34
      %s38 = sphi 0, %s35
      %s39 = sphi 0, %s36
      %s40 = sphi 0, %s37
      %s41 = sphi 0, %s38
      %s57 = sphi 0, %s59
      %s60 = sphi 0, %s57
      %s61 = sphi 0, %s60
      %s77 = sphi 0, %s61
      %s85 = sphi 0, %s87
      %s88 = sphi 0, %s85
      %s89 = sphi 0, %s88
      %s105 = sphi 0, %s89
      %s109 = sphi 0, %s109
      %s111 = sphi 0, %s109
      %s112 = sphi 0, %s111
      %s126 = sphi 0, %s112
      %s130 = sphi 0, %s130
      %s132 = sphi 0, %s130
      %s133 = sphi 0, %s132
      %s147 = sphi 0, %s133
      %s151 = sphi 0, %s151
      %s153 = sphi 0, %s151
      %s154 = sphi 0, %s153
      %s168 = sphi 0, %s154
      %s172 = sphi 0, %s172
      %s174 = sphi 0, %s172
      %s175 = sphi 0, %s174
      %s189 = sphi 0, %s175
      %s193 = sphi 0, %s193
      %s195 = sphi 0, %s193
      %s196 = sphi 0, %s195
      %s210 = sphi 0, %s196
      %s214 = sphi 0, %s214
      %s216 = sphi 0, %s214
      %s217 = sphi 0, %s216
      %s231 = sphi 0, %s217
      %s235 = sphi 0, %s235
      %s237 = sphi 0, %s235
      %s238 = sphi 0, %s237
      %s252 = sphi 0, %s238
      %s256 = sphi 0, %s256
      %s258 = sphi 0, %s256
      %s259 = sphi 0, %s258
      %s273 = sphi 0, %s259
      %s281 = sphi 0, %s283
      %s284 = sphi 0, %s281
      %s285 = sphi 0, %s284
      %s301 = sphi 0, %s285
    $region4: #{tpu_custom_call.1} parent=1 // loop_header_branch
      %29 = sbr.rel (%p27) target = $region8
    $region5: #{tpu_custom_call.1} parent=1 // loop_body
      %s31 = ssub.s32 %s26, 1
      %s32 = ssub.s32 %s26, 2
      %s42 = sadd.s32 1, %s35
      %p43 = scmp.ge.s32.totalorder %s42, 1
      %s44 = scalar_select %p43, 0, %s42
      %s45 = sadd.s32 1, %s34
      %s46 = scalar_select %p43, %s45, %s34
      %p47 = scmp.ge.s32.totalorder %s46, 1
      %s48 = scalar_select %p47, 0, %s46
      %s49 = sadd.s32 1, %s33
      %s50 = scalar_select %p47, %s49, %s33
      %p51 = scmp.ge.s32.totalorder %s50, 2
      %s52 = scalar_select %p51, 0, %s50
      %s53 = ssub.s32 %s33, %s52
      %s54 = ssub.s32 %s34, %s48
      %s55 = sor.u32 %s53, %s54
      %p56 = scmp.eq.s32.totalorder %s55, 0
      %s58 = sadd.s32 %s57, 1
      %s59 = scalar_select %p56, %s57, %s58
      %p62 = pneg %p56
      %p63 = scmp.eq.s32.totalorder %s26, 1
      %p64 = por %p62, %p63
      %p65 = scmp.ne.s32.totalorder %s57, %s60
      %p66 = scmp.eq.s32.totalorder %s26, 0
      %p67 = por %p65, %p66
      %p68 = scmp.ne.s32.totalorder %s57, %s60
      %p69 = scmp.eq.s32.totalorder %s31, 1
      %p70 = por %p68, %p69
      %p71 = scmp.ne.s32.totalorder %s60, %s61
      %p72 = scmp.eq.s32.totalorder %s31, 0
      %p73 = por %p71, %p72
      %p74 = scmp.ne.s32.totalorder %s60, %s61
      %p75 = scmp.eq.s32.totalorder %s32, 1
      %p76 = por %p74, %p75
      %p78 = scmp.ne.s32.totalorder %s61, %s77
      %p79 = scmp.eq.s32.totalorder %s32, 0
      %p80 = por %p78, %p79
      %s81 = ssub.s32 %s33, %s52
      %s82 = ssub.s32 %s35, %s44
      %s83 = sor.u32 %s81, %s82
      %p84 = scmp.eq.s32.totalorder %s83, 0
      %s86 = sadd.s32 %s85, 1
      %s87 = scalar_select %p84, %s85, %s86
      %p90 = pneg %p84
      %p91 = scmp.eq.s32.totalorder %s26, 1
      %p92 = por %p90, %p91
      %p93 = scmp.ne.s32.totalorder %s85, %s88
      %p94 = scmp.eq.s32.totalorder %s26, 0
      %p95 = por %p93, %p94
      %p96 = scmp.ne.s32.totalorder %s85, %s88
      %p97 = scmp.eq.s32.totalorder %s31, 1
      %p98 = por %p96, %p97
      %p99 = scmp.ne.s32.totalorder %s88, %s89
      %p100 = scmp.eq.s32.totalorder %s31, 0
      %p101 = por %p99, %p100
      %p102 = scmp.ne.s32.totalorder %s88, %s89
      %p103 = scmp.eq.s32.totalorder %s32, 1
      %p104 = por %p102, %p103
      %p106 = scmp.ne.s32.totalorder %s89, %s105
      %p107 = scmp.eq.s32.totalorder %s32, 0
      %p108 = por %p106, %p107
      %s110 = sadd.s32 %s109, 1
      %p113 = scmp.eq.s32.totalorder %s26, 1
      %p114 = scmp.ne.s32.totalorder %s109, %s111
      %p115 = scmp.eq.s32.totalorder %s26, 0
      %p116 = por %p114, %p115
      %p117 = scmp.ne.s32.totalorder %s109, %s111
      %p118 = scmp.eq.s32.totalorder %s31, 1
      %p119 = por %p117, %p118
      %p120 = scmp.ne.s32.totalorder %s111, %s112
      %p121 = scmp.eq.s32.totalorder %s31, 0
      %p122 = por %p120, %p121
      %p123 = scmp.ne.s32.totalorder %s111, %s112
      %p124 = scmp.eq.s32.totalorder %s32, 1
      %p125 = por %p123, %p124
      %p127 = scmp.ne.s32.totalorder %s112, %s126
      %p128 = scmp.eq.s32.totalorder %s32, 0
      %p129 = por %p127, %p128
      %s131 = sadd.s32 %s130, 1
      %p134 = scmp.eq.s32.totalorder %s26, 1
      %p135 = scmp.ne.s32.totalorder %s130, %s132
      %p136 = scmp.eq.s32.totalorder %s26, 0
      %p137 = por %p135, %p136
      %p138 = scmp.ne.s32.totalorder %s130, %s132
      %p139 = scmp.eq.s32.totalorder %s31, 1
      %p140 = por %p138, %p139
      %p141 = scmp.ne.s32.totalorder %s132, %s133
      %p142 = scmp.eq.s32.totalorder %s31, 0
      %p143 = por %p141, %p142
      %p144 = scmp.ne.s32.totalorder %s132, %s133
      %p145 = scmp.eq.s32.totalorder %s32, 1
      %p146 = por %p144, %p145
      %p148 = scmp.ne.s32.totalorder %s133, %s147
      %p149 = scmp.eq.s32.totalorder %s32, 0
      %p150 = por %p148, %p149
      %s152 = sadd.s32 %s151, 1
      %p155 = scmp.eq.s32.totalorder %s26, 1
      %p156 = scmp.ne.s32.totalorder %s151, %s153
      %p157 = scmp.eq.s32.totalorder %s26, 0
      %p158 = por %p156, %p157
      %p159 = scmp.ne.s32.totalorder %s151, %s153
      %p160 = scmp.eq.s32.totalorder %s31, 1
      %p161 = por %p159, %p160
      %p162 = scmp.ne.s32.totalorder %s153, %s154
      %p163 = scmp.eq.s32.totalorder %s31, 0
      %p164 = por %p162, %p163
      %p165 = scmp.ne.s32.totalorder %s153, %s154
      %p166 = scmp.eq.s32.totalorder %s32, 1
      %p167 = por %p165, %p166
      %p169 = scmp.ne.s32.totalorder %s154, %s168
      %p170 = scmp.eq.s32.totalorder %s32, 0
      %p171 = por %p169, %p170
      %s173 = sadd.s32 %s172, 1
      %p176 = scmp.eq.s32.totalorder %s26, 1
      %p177 = scmp.ne.s32.totalorder %s172, %s174
      %p178 = scmp.eq.s32.totalorder %s26, 0
      %p179 = por %p177, %p178
      %p180 = scmp.ne.s32.totalorder %s172, %s174
      %p181 = scmp.eq.s32.totalorder %s31, 1
      %p182 = por %p180, %p181
      %p183 = scmp.ne.s32.totalorder %s174, %s175
      %p184 = scmp.eq.s32.totalorder %s31, 0
      %p185 = por %p183, %p184
      %p186 = scmp.ne.s32.totalorder %s174, %s175
      %p187 = scmp.eq.s32.totalorder %s32, 1
      %p188 = por %p186, %p187
      %p190 = scmp.ne.s32.totalorder %s175, %s189
      %p191 = scmp.eq.s32.totalorder %s32, 0
      %p192 = por %p190, %p191
      %s194 = sadd.s32 %s193, 1
      %p197 = scmp.eq.s32.totalorder %s26, 1
      %p198 = scmp.ne.s32.totalorder %s193, %s195
      %p199 = scmp.eq.s32.totalorder %s26, 0
      %p200 = por %p198, %p199
      %p201 = scmp.ne.s32.totalorder %s193, %s195
      %p202 = scmp.eq.s32.totalorder %s31, 1
      %p203 = por %p201, %p202
      %p204 = scmp.ne.s32.totalorder %s195, %s196
      %p205 = scmp.eq.s32.totalorder %s31, 0
      %p206 = por %p204, %p205
      %p207 = scmp.ne.s32.totalorder %s195, %s196
      %p208 = scmp.eq.s32.totalorder %s32, 1
      %p209 = por %p207, %p208
      %p211 = scmp.ne.s32.totalorder %s196, %s210
      %p212 = scmp.eq.s32.totalorder %s32, 0
      %p213 = por %p211, %p212
      %s215 = sadd.s32 %s214, 1
      %p218 = scmp.eq.s32.totalorder %s26, 1
      %p219 = scmp.ne.s32.totalorder %s214, %s216
      %p220 = scmp.eq.s32.totalorder %s26, 0
      %p221 = por %p219, %p220
      %p222 = scmp.ne.s32.totalorder %s214, %s216
      %p223 = scmp.eq.s32.totalorder %s31, 1
      %p224 = por %p222, %p223
      %p225 = scmp.ne.s32.totalorder %s216, %s217
      %p226 = scmp.eq.s32.totalorder %s31, 0
      %p227 = por %p225, %p226
      %p228 = scmp.ne.s32.totalorder %s216, %s217
      %p229 = scmp.eq.s32.totalorder %s32, 1
      %p230 = por %p228, %p229
      %p232 = scmp.ne.s32.totalorder %s217, %s231
      %p233 = scmp.eq.s32.totalorder %s32, 0
      %p234 = por %p232, %p233
      %s236 = sadd.s32 %s235, 1
      %p239 = scmp.eq.s32.totalorder %s26, 1
      %p240 = scmp.ne.s32.totalorder %s235, %s237
      %p241 = scmp.eq.s32.totalorder %s26, 0
      %p242 = por %p240, %p241
      %p243 = scmp.ne.s32.totalorder %s235, %s237
      %p244 = scmp.eq.s32.totalorder %s31, 1
      %p245 = por %p243, %p244
      %p246 = scmp.ne.s32.totalorder %s237, %s238
      %p247 = scmp.eq.s32.totalorder %s31, 0
      %p248 = por %p246, %p247
      %p249 = scmp.ne.s32.totalorder %s237, %s238
      %p250 = scmp.eq.s32.totalorder %s32, 1
      %p251 = por %p249, %p250
      %p253 = scmp.ne.s32.totalorder %s238, %s252
      %p254 = scmp.eq.s32.totalorder %s32, 0
      %p255 = por %p253, %p254
      %s257 = sadd.s32 %s256, 1
      %p260 = scmp.eq.s32.totalorder %s26, 1
      %p261 = scmp.ne.s32.totalorder %s256, %s258
      %p262 = scmp.eq.s32.totalorder %s26, 0
      %p263 = por %p261, %p262
      %p264 = scmp.ne.s32.totalorder %s256, %s258
      %p265 = scmp.eq.s32.totalorder %s31, 1
      %p266 = por %p264, %p265
      %p267 = scmp.ne.s32.totalorder %s258, %s259
      %p268 = scmp.eq.s32.totalorder %s31, 0
      %p269 = por %p267, %p268
      %p270 = scmp.ne.s32.totalorder %s258, %s259
      %p271 = scmp.eq.s32.totalorder %s32, 1
      %p272 = por %p270, %p271
      %p274 = scmp.ne.s32.totalorder %s259, %s273
      %p275 = scmp.eq.s32.totalorder %s32, 0
      %p276 = por %p274, %p275
      %s277 = ssub.s32 %s33, %s52
      %s278 = ssub.s32 %s34, %s48
      %s279 = sor.u32 %s277, %s278
      %p280 = scmp.eq.s32.totalorder %s279, 0
      %s282 = sadd.s32 %s281, 1
      %s283 = scalar_select %p280, %s281, %s282
      %p286 = pneg %p280
      %p287 = scmp.eq.s32.totalorder %s26, 1
      %p288 = por %p286, %p287
      %p289 = scmp.ne.s32.totalorder %s281, %s284
      %p290 = scmp.eq.s32.totalorder %s26, 0
      %p291 = por %p289, %p290
      %p292 = scmp.ne.s32.totalorder %s281, %s284
      %p293 = scmp.eq.s32.totalorder %s31, 1
      %p294 = por %p292, %p293
      %p295 = scmp.ne.s32.totalorder %s284, %s285
      %p296 = scmp.eq.s32.totalorder %s31, 0
      %p297 = por %p295, %p296
      %p298 = scmp.ne.s32.totalorder %s284, %s285
      %p299 = scmp.eq.s32.totalorder %s32, 1
      %p300 = por %p298, %p299
      %p302 = scmp.ne.s32.totalorder %s285, %s301
      %p303 = scmp.eq.s32.totalorder %s32, 0
      %p304 = por %p302, %p303
      %p305 = scmp.le.s32.totalorder 1, %s26
      %p306 = scmp.lt.s32.totalorder %s26, 3
      %p307 = pnand %p305, %p306
      %p308 = pneg %p307
      // Predicated region
      $region9: #{tpu_custom_call.1} parent=5 // pred_check
        _
      $region10: #{tpu_custom_call.1} parent=5 // pred_check_branch
        %310 = sbr.rel (%p307) target = $region12
      $region11: #{tpu_custom_call.1} parent=5 // pred_region
        %s311 = ssub.s32 %s26, 1
        // Predicated region
        $region13: #{tpu_custom_call.1} parent=11 // pred_check
          %p312 = pneg %p122
        $region14: #{tpu_custom_call.1} parent=11 // pred_check_branch
          %314 = sbr.rel (%p312) target = $region16
        $region15: #{tpu_custom_call.1} parent=11 // pred_region
          %s316 = ssub.s32 256, 256
          %317 = vsyncadd [#allocation10], %s316
          %s318 = sshll.u32 [#allocation11], 4
          %s319 = int_to_ptr.vmem [resolvable:$true] %s318
          %324 = dma.hbm_to_vmem [thread:$0]  %s2, 256, %s319, [#allocation10], 64, 64, 4
        $region16: #{tpu_custom_call.1} parent=11 // pred_fallthru
          _
        // Predicated region
        $region17: #{tpu_custom_call.1} parent=11 // pred_check
          %p325 = pneg %p143
        $region18: #{tpu_custom_call.1} parent=11 // pred_check_branch
          %327 = sbr.rel (%p325) target = $region20
        $region19: #{tpu_custom_call.1} parent=11 // pred_region
          _
        $region20: #{tpu_custom_call.1} parent=11 // pred_fallthru
          _
        // Predicated region
        $region21: #{tpu_custom_call.1} parent=11 // pred_check
          %p328 = pneg %p164
        $region22: #{tpu_custom_call.1} parent=11 // pred_check_branch
          %330 = sbr.rel (%p328) target = $region24
        $region23: #{tpu_custom_call.1} parent=11 // pred_region
          %s332 = ssub.s32 256, 256
          %333 = vsyncadd [#allocation13], %s332
          %s334 = sshll.u32 [#allocation12], 4
          %s335 = int_to_ptr.vmem [resolvable:$true] %s334
          %340 = dma.hbm_to_vmem [thread:$0]  %s4, 256, %s335, [#allocation13], 64, 64, 4
        $region24: #{tpu_custom_call.1} parent=11 // pred_fallthru
          _
        // Predicated region
        $region25: #{tpu_custom_call.1} parent=11 // pred_check
          %p341 = pneg %p185
        $region26: #{tpu_custom_call.1} parent=11 // pred_check_branch
          %343 = sbr.rel (%p341) target = $region28
        $region27: #{tpu_custom_call.1} parent=11 // pred_region
          _
        $region28: #{tpu_custom_call.1} parent=11 // pred_fallthru
          _
        // Predicated region
        $region29: #{tpu_custom_call.1} parent=11 // pred_check
          %p344 = pneg %p206
        $region30: #{tpu_custom_call.1} parent=11 // pred_check_branch
          %346 = sbr.rel (%p344) target = $region32
        $region31: #{tpu_custom_call.1} parent=11 // pred_region
          _
        $region32: #{tpu_custom_call.1} parent=11 // pred_fallthru
          _
        // Predicated region
        $region33: #{tpu_custom_call.1} parent=11 // pred_check
          %p347 = pneg %p227
        $region34: #{tpu_custom_call.1} parent=11 // pred_check_branch
          %349 = sbr.rel (%p347) target = $region36
        $region35: #{tpu_custom_call.1} parent=11 // pred_region
          _
        $region36: #{tpu_custom_call.1} parent=11 // pred_fallthru
          _
        // Predicated region
        $region37: #{tpu_custom_call.1} parent=11 // pred_check
          %p350 = pneg %p248
        $region38: #{tpu_custom_call.1} parent=11 // pred_check_branch
          %352 = sbr.rel (%p350) target = $region40
        $region39: #{tpu_custom_call.1} parent=11 // pred_region
          %s354 = ssub.s32 1024, 1024
          %355 = vsyncadd [#allocation13], %s354
          %s356 = sshll.u32 [#allocation14], 4
          %s357 = int_to_ptr.vmem [resolvable:$true] %s356
          %362 = dma.hbm_to_vmem [thread:$0]  %s8, 1024, %s357, [#allocation13], 64, 64, 4
        $region40: #{tpu_custom_call.1} parent=11 // pred_fallthru
          _
        // Predicated region
        $region41: #{tpu_custom_call.1} parent=11 // pred_check
          %p363 = pneg %p269
        $region42: #{tpu_custom_call.1} parent=11 // pred_check_branch
          %365 = sbr.rel (%p363) target = $region44
        $region43: #{tpu_custom_call.1} parent=11 // pred_region
          _
        $region44: #{tpu_custom_call.1} parent=11 // pred_fallthru
          _
      $region12: #{tpu_custom_call.1} parent=5 // pred_fallthru
        _
      %p366 = scmp.lt.s32.totalorder %s26, 2
      // Predicated region
      $region45: #{tpu_custom_call.1} parent=5 // pred_check
        %p367 = pneg %p366
      $region46: #{tpu_custom_call.1} parent=5 // pred_check_branch
        %369 = sbr.rel (%p367) target = $region48
      $region47: #{tpu_custom_call.1} parent=5 // pred_region
        // Predicated region
        $region49: #{tpu_custom_call.1} parent=47 // pred_check
          %p370 = pneg %p67
        $region50: #{tpu_custom_call.1} parent=47 // pred_check_branch
          %372 = sbr.rel (%p370) target = $region52
        $region51: #{tpu_custom_call.1} parent=47 // pred_region
          %s373 = sand.u32 %s57, 1
          %s374 = scalar_lea.sflag [#allocation7], %s373
          %s375 = sand.u32 %s57, 1
          %s376 = smul.addr %s375, 8
          %s377 = scalar_lea.vmem [#allocation6], %s376
          %s379 = ssub.s32 128, 128
          %380 = vsyncadd %s374, %s379
          %s381 = sadd.s32 %s34, %s33
          %s382 = smul.addr %s381, 128
          %s383 = scalar_lea.hbm %s0, %s382
          %s385 = sshll.u32 %s377, 4
          %s386 = int_to_ptr.vmem [resolvable:$true] %s385
          %388 = dma.hbm_to_vmem [thread:$0]  %s383, 128, %s386, %s374
        $region52: #{tpu_custom_call.1} parent=47 // pred_fallthru
          _
        // Predicated region
        $region53: #{tpu_custom_call.1} parent=47 // pred_check
          %p389 = pneg %p95
        $region54: #{tpu_custom_call.1} parent=47 // pred_check_branch
          %391 = sbr.rel (%p389) target = $region56
        $region55: #{tpu_custom_call.1} parent=47 // pred_region
          %s392 = sand.u32 %s26, 1
          %s393 = scalar_lea.sflag [#allocation10], %s392
          %s394 = sand.u32 %s85, 1
          %s395 = smul.addr %s394, 8
          %s396 = scalar_lea.vmem [#allocation9], %s395
          %s398 = ssub.s32 128, 128
          %399 = vsyncadd %s393, %s398
          %s400 = sadd.s32 %s35, %s33
          %s401 = smul.addr %s400, 128
          %s402 = scalar_lea.hbm %s1, %s401
          %s404 = sshll.u32 %s396, 4
          %s405 = int_to_ptr.vmem [resolvable:$true] %s404
          %407 = dma.hbm_to_vmem [thread:$0]  %s402, 128, %s405, %s393
        $region56: #{tpu_custom_call.1} parent=47 // pred_fallthru
          _
      $region48: #{tpu_custom_call.1} parent=5 // pred_fallthru
        _
      %p408 = scmp.le.s32.totalorder 1, %s26
      %p409 = scmp.lt.s32.totalorder %s26, 3
      %p410 = pnand %p408, %p409
      %p411 = pneg %p410
      // Predicated region
      $region57: #{tpu_custom_call.1} parent=5 // pred_check
        _
      $region58: #{tpu_custom_call.1} parent=5 // pred_check_branch
        %413 = sbr.rel (%p410) target = $region60
      $region59: #{tpu_custom_call.1} parent=5 // pred_region
        %s414 = ssub.s32 %s26, 1
        %s415 = sand.u32 %s60, 1
        %s416 = scalar_lea.sflag [#allocation7], %s415
        %s417 = sand.u32 %s60, 1
        %s418 = smul.addr %s417, 8
        %s419 = scalar_lea.vmem [#allocation6], %s418
        // Predicated region
        $region61: #{tpu_custom_call.1} parent=59 // pred_check
          %p420 = pneg %p73
        $region62: #{tpu_custom_call.1} parent=59 // pred_check_branch
          %422 = sbr.rel (%p420) target = $region64
        $region63: #{tpu_custom_call.1} parent=59 // pred_region
          %423 = dma.done %s416, 128
        $region64: #{tpu_custom_call.1} parent=59 // pred_fallthru
          _
        %s424 = sand.u32 %s31, 1
        %s425 = scalar_lea.sflag [#allocation10], %s424
        %s426 = sand.u32 %s88, 1
        %s427 = smul.addr %s426, 8
        %s428 = scalar_lea.vmem [#allocation9], %s427
        // Predicated region
        $region65: #{tpu_custom_call.1} parent=59 // pred_check
          %p429 = pneg %p101
        $region66: #{tpu_custom_call.1} parent=59 // pred_check_branch
          %431 = sbr.rel (%p429) target = $region68
        $region67: #{tpu_custom_call.1} parent=59 // pred_region
          %432 = dma.done %s425, 128
        $region68: #{tpu_custom_call.1} parent=59 // pred_fallthru
          _
        // Predicated region
        $region69: #{tpu_custom_call.1} parent=59 // pred_check
          %p433 = pneg %p122
        $region70: #{tpu_custom_call.1} parent=59 // pred_check_branch
          %435 = sbr.rel (%p433) target = $region72
        $region71: #{tpu_custom_call.1} parent=59 // pred_region
          %436 = dma.done [#allocation10], 256
        $region72: #{tpu_custom_call.1} parent=59 // pred_fallthru
          _
        // Predicated region
        $region73: #{tpu_custom_call.1} parent=59 // pred_check
          %p437 = pneg %p164
        $region74: #{tpu_custom_call.1} parent=59 // pred_check_branch
          %439 = sbr.rel (%p437) target = $region76
        $region75: #{tpu_custom_call.1} parent=59 // pred_region
          %440 = dma.done [#allocation13], 256
        $region76: #{tpu_custom_call.1} parent=59 // pred_fallthru
          _
        // Predicated region
        $region77: #{tpu_custom_call.1} parent=59 // pred_check
          %p441 = pneg %p248
        $region78: #{tpu_custom_call.1} parent=59 // pred_check_branch
          %443 = sbr.rel (%p441) target = $region80
        $region79: #{tpu_custom_call.1} parent=59 // pred_region
          %444 = dma.done [#allocation13], 1024
        $region80: #{tpu_custom_call.1} parent=59 // pred_fallthru
          _
        %s445 = sand.u32 %s60, 1
        %s446 = scalar_lea.sflag [#allocation7], %s445
        %s447 = sand.u32 %s60, 1
        %s448 = smul.addr %s447, 8
        %s449 = scalar_lea.vmem [#allocation6], %s448
        %p450 = pneg %p73
        %p451 = pneg %p70
        %s452 = sand.u32 %s31, 1
        %s453 = scalar_lea.sflag [#allocation10], %s452
        %s454 = sand.u32 %s88, 1
        %s455 = smul.addr %s454, 8
        %s456 = scalar_lea.vmem [#allocation9], %s455
        %p457 = pneg %p101
        %p458 = pneg %p98
        %p459 = pneg %p122
        %p460 = pneg %p119
        %p461 = pneg %p143
        %p462 = pneg %p140
        %p463 = pneg %p164
        %p464 = pneg %p161
        %p465 = pneg %p185
        %p466 = pneg %p182
        %p467 = pneg %p206
        %p468 = pneg %p203
        %p469 = pneg %p227
        %p470 = pneg %p224
        %p471 = pneg %p248
        %p472 = pneg %p245
        %p473 = pneg %p269
        %p474 = pneg %p266
        %p475 = pneg %p297
        %p476 = pneg %p294
        %s477 = sand.u32 %s284, 1
        %s478 = scalar_lea.sflag [#allocation8], %s477
        %s479 = sand.u32 %s284, 1
        %s480 = smul.addr %s479, 8
        %s481 = scalar_lea.vmem [#allocation15], %s480
        %p483 = scmp.eq.s32.totalorder %s38, 0
        // Predicated region
        $region81: #{tpu_custom_call.1} parent=59 // pred_check
          %p484 = pneg %p483
        $region82: #{tpu_custom_call.1} parent=59 // pred_check_branch
          %486 = sbr.rel (%p484) target = $region84
        $region83: #{tpu_custom_call.1} parent=59 // pred_region
          %vm487 = vcmask 7168
          %488 = vst.msk [vmem:[#allocation3] sm:$0xff] %vm487, -inf
          %489 = vst.msk [vmem:[#allocation4] sm:$0xff] %vm487, 0.0
          %490 = vst [vmem:[#allocation5] sm:$0xff] 0.0
          %v491 = vld [vmem:[%s419] sm:$0xff]
          %v492 = vpack.c.bf16 %v491, %v491
          %v493 = vld [vmem:[#allocation11] sm:$0xf]
          %v494 = vld [vmem:[#allocation11 + $0x4] sm:$0xf]
          %v495 = vld [vmem:[#allocation11 + $0x8] sm:$0xf]
          %v496 = vld [vmem:[#allocation11 + $0xc] sm:$0xf]
          %v497 = vld [vmem:[%s3] sm:$0x1]
          %v499 = vlaneseq
          %v500 = vshrl.u32 %v499, 7
          %v501 = vsub.s32 0, %v500
          %v502 = vrot.slane %v497, %v501
          %v508 = vunpack.c.l.b16 %v493
          %v509 = vunpack.c.l.b16 %v494
          %v510 = vunpack.c.l.b16 %v495
          %v511 = vunpack.c.l.b16 %v496
          %v512 = vpack.c.b16 %v509, %v508
          %v513 = vpack.c.b16 %v511, %v510
          %vm516 = vcmask 261120
          %v518 = vsel %vm516, %v492, 0
          %520 = vmatprep.subr.bf16.mxu0 0
          %521 = vmatpush1.bf16.msra.mxu0 %v512
          %522 = vmatprep.subr.bf16.mxu0 0
          %523 = vmatpush1.bf16.msra.mxu0 %v513
          %524 = vmatprep.subr.bf16.mxu0 0
          %525 = vmatpush1.bf16.msra.mxu0 0
          %526 = vmatprep.subr.bf16.mxu0 0
          %527 = vmatpush1.bf16.msra.mxu0 0
          %528 = vmatprep.subr.bf16.mxu0 0
          %529 = vmatpush1.bf16.msra.mxu0 0
          %530 = vmatprep.subr.bf16.mxu0 0
          %531 = vmatpush1.bf16.msra.mxu0 0
          %532 = vmatprep.subr.bf16.mxu0 0
          %533 = vmatpush1.bf16.msra.mxu0 0
          %534 = vmatprep.subr.bf16.mxu0 0
          %535 = vmatpush1.bf16.msra.mxu0 0
          %536 = vmatprep.subr.bf16.mxu0 0
          %537 = vmatpush1.bf16.msra.mxu0 0
          %538 = vmatprep.subr.bf16.mxu0 0
          %539 = vmatpush1.bf16.msra.mxu0 0
          %540 = vmatprep.subr.bf16.mxu0 0
          %541 = vmatpush1.bf16.msra.mxu0 0
          %542 = vmatprep.subr.bf16.mxu0 0
          %543 = vmatpush1.bf16.msra.mxu0 0
          %544 = vmatprep.subr.bf16.mxu0 0
          %545 = vmatpush1.bf16.msra.mxu0 0
          %546 = vmatprep.subr.bf16.mxu0 0
          %547 = vmatpush1.bf16.msra.mxu0 0
          %548 = vmatprep.subr.bf16.mxu0 0
          %549 = vmatpush1.bf16.msra.mxu0 0
          %550 = vmatprep.subr.bf16.mxu0 0
          %551 = vmatpush1.bf16.msra.mxu0 0
          %552 = vmatprep.mubr.bf16.mxu0 0
          %553 = vmatmul.mubr.bf16.gmra.mrb[0].mxu0 %v518
          %v554 = vpop.f32.mrb[0].mxu0
          %v555 = vadd.f32 %v502, %v554
          %v556 = vpop.f32.mrb[0].mxu0
          %v557 = vpop.f32.mrb[0].mxu0
          %v558 = vpop.f32.mrb[0].mxu0
          %559 = vdwg.mxu0
          %v560 = vmul.f32 %v555, 0.17677669
          %v561 = vpack.c.bf16 %v560, %v560
          %562 = vst [vmem:[#allocation2] sm:$0xf] %v561
        $region84: #{tpu_custom_call.1} parent=59 // pred_fallthru
          _
        %p563 = scmp.le.s32.totalorder %s38, %s37
        // Predicated region
        $region85: #{tpu_custom_call.1} parent=59 // pred_check
          %p564 = pneg %p563
        $region86: #{tpu_custom_call.1} parent=59 // pred_check_branch
          %566 = sbr.rel (%p564) target = $region88
        $region87: #{tpu_custom_call.1} parent=59 // pred_region
          %v567 = vld [vmem:[%s428] sm:$0xff]
          %v568 = vpack.c.bf16 %v567, %v567
          %v569 = vld [vmem:[#allocation12] sm:$0xf]
          %v570 = vld [vmem:[#allocation12 + $0x4] sm:$0xf]
          %v571 = vld [vmem:[#allocation12 + $0x8] sm:$0xf]
          %v572 = vld [vmem:[#allocation12 + $0xc] sm:$0xf]
          %v573 = vld [vmem:[%s5] sm:$0x1]
          %v575 = vlaneseq
          %v576 = vshrl.u32 %v575, 7
          %v577 = vsub.s32 0, %v576
          %v578 = vrot.slane %v573, %v577
          %v584 = vunpack.c.l.b16 %v569
          %v585 = vunpack.c.l.b16 %v570
          %v586 = vunpack.c.l.b16 %v571
          %v587 = vunpack.c.l.b16 %v572
          %v588 = vpack.c.b16 %v585, %v584
          %v589 = vpack.c.b16 %v587, %v586
          %vm592 = vcmask 261120
          %v594 = vsel %vm592, %v568, 0
          %596 = vmatprep.subr.bf16.mxu0 0
          %597 = vmatpush1.bf16.msra.mxu0 %v588
          %598 = vmatprep.subr.bf16.mxu0 0
          %599 = vmatpush1.bf16.msra.mxu0 %v589
          %600 = vmatprep.subr.bf16.mxu0 0
          %601 = vmatpush1.bf16.msra.mxu0 0
          %602 = vmatprep.subr.bf16.mxu0 0
          %603 = vmatpush1.bf16.msra.mxu0 0
          %604 = vmatprep.subr.bf16.mxu0 0
          %605 = vmatpush1.bf16.msra.mxu0 0
          %606 = vmatprep.subr.bf16.mxu0 0
          %607 = vmatpush1.bf16.msra.mxu0 0
          %608 = vmatprep.subr.bf16.mxu0 0
          %609 = vmatpush1.bf16.msra.mxu0 0
          %610 = vmatprep.subr.bf16.mxu0 0
          %611 = vmatpush1.bf16.msra.mxu0 0
          %612 = vmatprep.subr.bf16.mxu0 0
          %613 = vmatpush1.bf16.msra.mxu0 0
          %614 = vmatprep.subr.bf16.mxu0 0
          %615 = vmatpush1.bf16.msra.mxu0 0
          %616 = vmatprep.subr.bf16.mxu0 0
          %617 = vmatpush1.bf16.msra.mxu0 0
          %618 = vmatprep.subr.bf16.mxu0 0
          %619 = vmatpush1.bf16.msra.mxu0 0
          %620 = vmatprep.subr.bf16.mxu0 0
          %621 = vmatpush1.bf16.msra.mxu0 0
          %622 = vmatprep.subr.bf16.mxu0 0
          %623 = vmatpush1.bf16.msra.mxu0 0
          %624 = vmatprep.subr.bf16.mxu0 0
          %625 = vmatpush1.bf16.msra.mxu0 0
          %626 = vmatprep.subr.bf16.mxu0 0
          %627 = vmatpush1.bf16.msra.mxu0 0
          %628 = vmatprep.mubr.bf16.mxu0 0
          %629 = vmatmul.mubr.bf16.gmra.mrb[0].mxu0 %v594
          %v630 = vpop.f32.mrb[0].mxu0
          %v631 = vadd.f32 %v578, %v630
          %v632 = vpop.f32.mrb[0].mxu0
          %v633 = vpop.f32.mrb[0].mxu0
          %v634 = vpop.f32.mrb[0].mxu0
          %635 = vdwg.mxu0
          %v636 = vpack.c.bf16 %v631, %v631
          %v637 = vld [vmem:[%s6] sm:$0xf]
          %v638 = vld [vmem:[%s6 + $0x4] sm:$0xf]
          %v639 = vld [vmem:[%s6 + $0x8] sm:$0xf]
          %v640 = vld [vmem:[%s6 + $0xc] sm:$0xf]
          %v641 = vld [vmem:[%s7] sm:$0x1]
          %v643 = vlaneseq
          %v644 = vshrl.u32 %v643, 7
          %v645 = vsub.s32 0, %v644
          %v646 = vrot.slane %v641, %v645
          %v652 = vunpack.c.l.b16 %v637
          %v653 = vunpack.c.l.b16 %v638
          %v654 = vunpack.c.l.b16 %v639
          %v655 = vunpack.c.l.b16 %v640
          %v656 = vpack.c.b16 %v653, %v652
          %v657 = vpack.c.b16 %v655, %v654
          %660 = vmatprep.subr.bf16.mxu0 0
          %661 = vmatpush1.bf16.msra.mxu0 %v656
          %662 = vmatprep.subr.bf16.mxu0 0
          %663 = vmatpush1.bf16.msra.mxu0 %v657
          %664 = vmatprep.subr.bf16.mxu0 0
          %665 = vmatpush1.bf16.msra.mxu0 0
          %666 = vmatprep.subr.bf16.mxu0 0
          %667 = vmatpush1.bf16.msra.mxu0 0
          %668 = vmatprep.subr.bf16.mxu0 0
          %669 = vmatpush1.bf16.msra.mxu0 0
          %670 = vmatprep.subr.bf16.mxu0 0
          %671 = vmatpush1.bf16.msra.mxu0 0
          %672 = vmatprep.subr.bf16.mxu0 0
          %673 = vmatpush1.bf16.msra.mxu0 0
          %674 = vmatprep.subr.bf16.mxu0 0
          %675 = vmatpush1.bf16.msra.mxu0 0
          %676 = vmatprep.subr.bf16.mxu0 0
          %677 = vmatpush1.bf16.msra.mxu0 0
          %678 = vmatprep.subr.bf16.mxu0 0
          %679 = vmatpush1.bf16.msra.mxu0 0
          %680 = vmatprep.subr.bf16.mxu0 0
          %681 = vmatpush1.bf16.msra.mxu0 0
          %682 = vmatprep.subr.bf16.mxu0 0
          %683 = vmatpush1.bf16.msra.mxu0 0
          %684 = vmatprep.subr.bf16.mxu0 0
          %685 = vmatpush1.bf16.msra.mxu0 0
          %686 = vmatprep.subr.bf16.mxu0 0
          %687 = vmatpush1.bf16.msra.mxu0 0
          %688 = vmatprep.subr.bf16.mxu0 0
          %689 = vmatpush1.bf16.msra.mxu0 0
          %690 = vmatprep.subr.bf16.mxu0 0
          %691 = vmatpush1.bf16.msra.mxu0 0
          %692 = vmatprep.mubr.bf16.mxu0 0
          %693 = vmatmul.mubr.bf16.gmra.mrb[0].mxu0 %v594
          %v694 = vpop.f32.mrb[0].mxu0
          %v695 = vadd.f32 %v646, %v694
          %v696 = vpop.f32.mrb[0].mxu0
          %v697 = vpop.f32.mrb[0].mxu0
          %v698 = vpop.f32.mrb[0].mxu0
          %699 = vdwg.mxu0
          %v700 = vpack.c.bf16 %v695, %v695
          %v701 = vld [vmem:[#allocation2] sm:$0xf]
          %s702 = smul.u32 %s37, 8
          %v703 = vlaneseq
          %v704 = vshrl.u32 %v703, 7
          %v705 = vstv %s702
          %v706 = vadd.s32 %v705, %v704
          %s707 = smul.u32 %s38, 8
          %v708 = vlaneseq
          %v709 = vand.u32 %v708, 127
          %v710 = vstv %s707
          %v711 = vadd.s32 %v710, %v709
          %vm712 = vcmp.gt.s32.totalorder %v711, %v706
          %v713 = vsel %vm712, -1e+30, 0.0
          %714 = vmatprep.subr.bf16.mxu0 0
          %715 = vmatpush1.bf16.xpose.msra.mxu0 %v636
          %716 = vmatprep.subr.bf16.mxu0 0
          %717 = vmatpush1.bf16.xpose.msra.mxu0 0
          %718 = vmatprep.subr.bf16.mxu0 0
          %719 = vmatpush1.bf16.xpose.msra.mxu0 0
          %720 = vmatprep.subr.bf16.mxu0 0
          %721 = vmatpush1.bf16.xpose.msra.mxu0 0
          %722 = vmatprep.subr.bf16.mxu0 0
          %723 = vmatpush1.bf16.xpose.msra.mxu0 0
          %724 = vmatprep.subr.bf16.mxu0 0
          %725 = vmatpush1.bf16.xpose.msra.mxu0 0
          %726 = vmatprep.subr.bf16.mxu0 0
          %727 = vmatpush1.bf16.xpose.msra.mxu0 0
          %728 = vmatprep.subr.bf16.mxu0 0
          %729 = vmatpush1.bf16.xpose.msra.mxu0 0
          %730 = vmatprep.subr.bf16.mxu0 0
          %731 = vmatpush1.bf16.xpose.msra.mxu0 0
          %732 = vmatprep.subr.bf16.mxu0 0
          %733 = vmatpush1.bf16.xpose.msra.mxu0 0
          %734 = vmatprep.subr.bf16.mxu0 0
          %735 = vmatpush1.bf16.xpose.msra.mxu0 0
          %736 = vmatprep.subr.bf16.mxu0 0
          %737 = vmatpush1.bf16.xpose.msra.mxu0 0
          %738 = vmatprep.subr.bf16.mxu0 0
          %739 = vmatpush1.bf16.xpose.msra.mxu0 0
          %740 = vmatprep.subr.bf16.mxu0 0
          %741 = vmatpush1.bf16.xpose.msra.mxu0 0
          %742 = vmatprep.subr.bf16.mxu0 0
          %743 = vmatpush1.bf16.xpose.msra.mxu0 0
          %744 = vmatprep.subr.bf16.mxu0 0
          %745 = vmatpush1.bf16.xpose.msra.mxu0 0
          %746 = vmatprep.mubr.bf16.mxu0 0
          %747 = vmatmul.mubr.bf16.gmra.mrb[0].mxu0 %v701
          %v748 = vpop.f32.mrb[0].mxu0
          %v749 = vadd.f32 %v713, %v748
          %v750 = vpop.f32.mrb[0].mxu0
          %v751 = vpop.f32.mrb[0].mxu0
          %v752 = vpop.f32.mrb[0].mxu0
          %753 = vdwg.mxu0
          %v754 = vld [vmem:[#allocation3] sm:$0xff]
          %vm755 = vcmask 64512
          %v756 = vsel %vm755, %v749, -inf
          %757 = vmax.xlane.f32.xlu0 %v756
          %v758 = vpop.xlane.xlu0 %757
          %v759 = vmax.f32 %v754, %v758
          %v760 = vsub.f32 %v754, %v759
          %v761 = vmul.f32 %v760, 1.442695
          %v762 = vpow.pop %v761
          %764 = vset.pattern.permute.xlu0 0
          %765 = vperm.xlu0 %764, %v759
          %v766 = vpop.permute.xlu0 %765
          %v768 = vsub.f32 %v749, %v766
          %v769 = vmul.f32 %v768, 1.442695
          %v770 = vpow.pop %v769
          %v771 = vld [vmem:[#allocation4] sm:$0xff]
          %v772 = vmul.f32 %v762, %v771
          %v773 = vsel %vm755, %v770, 0.0
          %774 = vadd.xlane.f32.xlu0 %v773
          %v775 = vpop.xlane.xlu0 %774
          %v776 = vadd.f32 %v772, %v775
          %vm777 = vcmask 7168
          %778 = vst.msk [vmem:[#allocation4] sm:$0xff] %vm777, %v776
          %v779 = vld [vmem:[#allocation5] sm:$0xff]
          %781 = vset.pattern.permute.xlu0 0
          %782 = vperm.xlu0 %781, %v762
          %v783 = vpop.permute.xlu0 %782
          %v785 = vmul.f32 %v783, %v779
          %v786 = vpack.c.bf16 %v770, %v770
          %v788 = vsel %vm755, %v786, 0
          %vm790 = vcmask 1043456
          %v792 = vsel %vm790, %v700, 0
          %794 = vmatprep.subr.bf16.mxu0 0
          %795 = vmatpush1.bf16.msra.mxu0 %v792
          %796 = vmatprep.subr.bf16.mxu0 0
          %797 = vmatpush1.bf16.msra.mxu0 0
          %798 = vmatprep.subr.bf16.mxu0 0
          %799 = vmatpush1.bf16.msra.mxu0 0
          %800 = vmatprep.subr.bf16.mxu0 0
          %801 = vmatpush1.bf16.msra.mxu0 0
          %802 = vmatprep.subr.bf16.mxu0 0
          %803 = vmatpush1.bf16.msra.mxu0 0
          %804 = vmatprep.subr.bf16.mxu0 0
          %805 = vmatpush1.bf16.msra.mxu0 0
          %806 = vmatprep.subr.bf16.mxu0 0
          %807 = vmatpush1.bf16.msra.mxu0 0
          %808 = vmatprep.subr.bf16.mxu0 0
          %809 = vmatpush1.bf16.msra.mxu0 0
          %810 = vmatprep.subr.bf16.mxu0 0
          %811 = vmatpush1.bf16.msra.mxu0 0
          %812 = vmatprep.subr.bf16.mxu0 0
          %813 = vmatpush1.bf16.msra.mxu0 0
          %814 = vmatprep.subr.bf16.mxu0 0
          %815 = vmatpush1.bf16.msra.mxu0 0
          %816 = vmatprep.subr.bf16.mxu0 0
          %817 = vmatpush1.bf16.msra.mxu0 0
          %818 = vmatprep.subr.bf16.mxu0 0
          %819 = vmatpush1.bf16.msra.mxu0 0
          %820 = vmatprep.subr.bf16.mxu0 0
          %821 = vmatpush1.bf16.msra.mxu0 0
          %822 = vmatprep.subr.bf16.mxu0 0
          %823 = vmatpush1.bf16.msra.mxu0 0
          %824 = vmatprep.subr.bf16.mxu0 0
          %825 = vmatpush1.bf16.msra.mxu0 0
          %826 = vmatprep.mubr.bf16.mxu0 0
          %827 = vmatmul.mubr.bf16.gmra.mrb[0].mxu0 %v788
          %v828 = vpop.f32.mrb[0].mxu0
          %v829 = vadd.f32 0.0, %v828
          %v830 = vpop.f32.mrb[0].mxu0
          %v831 = vpop.f32.mrb[0].mxu0
          %v832 = vpop.f32.mrb[0].mxu0
          %833 = vdwg.mxu0
          %v834 = vadd.f32 %v785, %v829
          %835 = vst [vmem:[#allocation5] sm:$0xff] %v834
          %836 = vst.msk [vmem:[#allocation3] sm:$0xff] %vm777, %v759
        $region88: #{tpu_custom_call.1} parent=59 // pred_fallthru
          _
        %p837 = scmp.eq.s32.totalorder %s38, %s37
        // Predicated region
        $region89: #{tpu_custom_call.1} parent=59 // pred_check
          %p838 = pneg %p837
        $region90: #{tpu_custom_call.1} parent=59 // pred_check_branch
          %840 = sbr.rel (%p838) target = $region92
        $region91: #{tpu_custom_call.1} parent=59 // pred_region
          %v841 = vld [vmem:[#allocation5] sm:$0xff]
          %v842 = vld [vmem:[#allocation4] sm:$0xff]
          %v843 = vrcp.pop %v842
          %845 = vset.pattern.permute.xlu0 0
          %846 = vperm.xlu0 %845, %v843
          %v847 = vpop.permute.xlu0 %846
          %v849 = vmul.f32 %v841, %v847
          %v850 = vpack.c.bf16 %v849, %v849
          %v851 = vld [vmem:[#allocation14] sm:$0xf]
          %v852 = vld [vmem:[#allocation14 + $0x4] sm:$0xf]
          %v853 = vld [vmem:[#allocation14 + $0x8] sm:$0xf]
          %v854 = vld [vmem:[#allocation14 + $0xc] sm:$0xf]
          %v855 = vld [vmem:[#allocation14 + $0x10] sm:$0xf]
          %v856 = vld [vmem:[#allocation14 + $0x14] sm:$0xf]
          %v857 = vld [vmem:[#allocation14 + $0x18] sm:$0xf]
          %v858 = vld [vmem:[#allocation14 + $0x1c] sm:$0xf]
          %v859 = vld [vmem:[#allocation14 + $0x20] sm:$0xf]
          %v860 = vld [vmem:[#allocation14 + $0x24] sm:$0xf]
          %v861 = vld [vmem:[#allocation14 + $0x28] sm:$0xf]
          %v862 = vld [vmem:[#allocation14 + $0x2c] sm:$0xf]
          %v863 = vld [vmem:[#allocation14 + $0x30] sm:$0xf]
          %v864 = vld [vmem:[#allocation14 + $0x34] sm:$0xf]
          %v865 = vld [vmem:[#allocation14 + $0x38] sm:$0xf]
          %v866 = vld [vmem:[#allocation14 + $0x3c] sm:$0xf]
          %v867 = vld [vmem:[%s9] sm:$0x1]
          %v869 = vlaneseq
          %v870 = vshrl.u32 %v869, 7
          %v871 = vsub.s32 0, %v870
          %v872 = vrot.slane %v867, %v871
          %v890 = vunpack.c.l.b16 %v851
          %v891 = vunpack.c.l.b16 %v852
          %v892 = vunpack.c.l.b16 %v853
          %v893 = vunpack.c.l.b16 %v854
          %v894 = vunpack.c.l.b16 %v855
          %v895 = vunpack.c.l.b16 %v856
          %v896 = vunpack.c.l.b16 %v857
          %v897 = vunpack.c.l.b16 %v858
          %v898 = vunpack.c.l.b16 %v859
          %v899 = vunpack.c.l.b16 %v860
          %v900 = vunpack.c.l.b16 %v861
          %v901 = vunpack.c.l.b16 %v862
          %v902 = vunpack.c.l.b16 %v863
          %v903 = vunpack.c.l.b16 %v864
          %v904 = vunpack.c.l.b16 %v865
          %v905 = vunpack.c.l.b16 %v866
          %v906 = vpack.c.b16 %v891, %v890
          %v907 = vpack.c.b16 %v893, %v892
          %v908 = vpack.c.b16 %v895, %v894
          %v909 = vpack.c.b16 %v897, %v896
          %v910 = vpack.c.b16 %v899, %v898
          %v911 = vpack.c.b16 %v901, %v900
          %v912 = vpack.c.b16 %v903, %v902
          %v913 = vpack.c.b16 %v905, %v904
          %922 = vmatprep.subr.bf16.mxu0 0
          %923 = vmatpush1.bf16.msra.mxu0 %v906
          %924 = vmatprep.subr.bf16.mxu0 0
          %925 = vmatpush1.bf16.msra.mxu0 %v907
          %926 = vmatprep.subr.bf16.mxu0 0
          %927 = vmatpush1.bf16.msra.mxu0 %v908
          %928 = vmatprep.subr.bf16.mxu0 0
          %929 = vmatpush1.bf16.msra.mxu0 %v909
          %930 = vmatprep.subr.bf16.mxu0 0
          %931 = vmatpush1.bf16.msra.mxu0 %v910
          %932 = vmatprep.subr.bf16.mxu0 0
          %933 = vmatpush1.bf16.msra.mxu0 %v911
          %934 = vmatprep.subr.bf16.mxu0 0
          %935 = vmatpush1.bf16.msra.mxu0 %v912
          %936 = vmatprep.subr.bf16.mxu0 0
          %937 = vmatpush1.bf16.msra.mxu0 %v913
          %938 = vmatprep.subr.bf16.mxu0 0
          %939 = vmatpush1.bf16.msra.mxu0 0
          %940 = vmatprep.subr.bf16.mxu0 0
          %941 = vmatpush1.bf16.msra.mxu0 0
          %942 = vmatprep.subr.bf16.mxu0 0
          %943 = vmatpush1.bf16.msra.mxu0 0
          %944 = vmatprep.subr.bf16.mxu0 0
          %945 = vmatpush1.bf16.msra.mxu0 0
          %946 = vmatprep.subr.bf16.mxu0 0
          %947 = vmatpush1.bf16.msra.mxu0 0
          %948 = vmatprep.subr.bf16.mxu0 0
          %949 = vmatpush1.bf16.msra.mxu0 0
          %950 = vmatprep.subr.bf16.mxu0 0
          %951 = vmatpush1.bf16.msra.mxu0 0
          %952 = vmatprep.subr.bf16.mxu0 0
          %953 = vmatpush1.bf16.msra.mxu0 0
          %954 = vmatprep.mubr.bf16.mxu0 0
          %955 = vmatmul.mubr.bf16.gmra.mrb[0].mxu0 %v850
          %v956 = vpop.f32.mrb[0].mxu0
          %v957 = vadd.f32 %v872, %v956
          %v958 = vpop.f32.mrb[0].mxu0
          %v959 = vpop.f32.mrb[0].mxu0
          %v960 = vpop.f32.mrb[0].mxu0
          %961 = vdwg.mxu0
          %962 = vst [vmem:[%s481] sm:$0xff] %v957
        $region92: #{tpu_custom_call.1} parent=59 // pred_fallthru
          _
        %s963 = sand.u32 %s284, 1
        %s964 = scalar_lea.sflag [#allocation8], %s963
        %s965 = sand.u32 %s284, 1
        %s966 = smul.addr %s965, 8
        %s967 = scalar_lea.vmem [#allocation15], %s966
        // Predicated region
        $region93: #{tpu_custom_call.1} parent=59 // pred_check
          %p968 = pneg %p294
        $region94: #{tpu_custom_call.1} parent=59 // pred_check_branch
          %970 = sbr.rel (%p968) target = $region96
        $region95: #{tpu_custom_call.1} parent=59 // pred_region
          %s972 = ssub.s32 128, 128
          %973 = vsyncadd %s964, %s972
          %s974 = sadd.s32 %s37, %s36
          %s975 = smul.addr %s974, 128
          %s976 = scalar_lea.hbm %s10, %s975
          %s978 = sshll.u32 %s967, 4
          %s979 = int_to_ptr.vmem [resolvable:$true] %s978
          %981 = dma.vmem_to_hbm [thread:$0]  %s979, 128, %s976, %s964
        $region96: #{tpu_custom_call.1} parent=59 // pred_fallthru
          _
      $region60: #{tpu_custom_call.1} parent=5 // pred_fallthru
        _
      %p982 = scmp.le.s32.totalorder 2, %s26
      // Predicated region
      $region97: #{tpu_custom_call.1} parent=5 // pred_check
        %p983 = pneg %p982
      $region98: #{tpu_custom_call.1} parent=5 // pred_check_branch
        %985 = sbr.rel (%p983) target = $region100
      $region99: #{tpu_custom_call.1} parent=5 // pred_region
        %s986 = ssub.s32 %s26, 2
        // Predicated region
        $region101: #{tpu_custom_call.1} parent=99 // pred_check
          %p987 = pneg %p300
        $region102: #{tpu_custom_call.1} parent=99 // pred_check_branch
          %989 = sbr.rel (%p987) target = $region104
        $region103: #{tpu_custom_call.1} parent=99 // pred_region
          %s990 = sand.u32 %s285, 1
          %s991 = scalar_lea.sflag [#allocation8], %s990
          %s992 = sand.u32 %s285, 1
          %s993 = smul.addr %s992, 8
          %s994 = scalar_lea.vmem [#allocation15], %s993
          %995 = dma.done %s991, 128
        $region104: #{tpu_custom_call.1} parent=99 // pred_fallthru
          _
      $region100: #{tpu_custom_call.1} parent=5 // pred_fallthru
        _
    $region6: #{tpu_custom_call.1} parent=1 // loop_footer
      %s30 = sadd.s32 1, %s26
    $region7: #{tpu_custom_call.1} parent=1 // loop_footer_branch
      %25 = sbr.rel target = $region3
    $region8: #{tpu_custom_call.1} parent=1 // loop_exit
      _
    %996 = vsyncpa [#allocation7], 1
    %s997 = scalar_lea.sflag [#allocation7], 1
    %998 = vsyncpa %s997, 1
    %999 = vsyncpa [#allocation10], 1
    %s1000 = scalar_lea.sflag [#allocation10], 1
    %1001 = vsyncpa %s1000, 1
    %1002 = vsyncpa [#allocation13], 1
    %1003 = vsyncpa [#allocation8], 1
    %s1004 = scalar_lea.sflag [#allocation8], 1
    %1005 = vsyncpa %s1004, 1

</llo_original>
